<compile_context>
chip_gen: v6e
topology: v6e:2x2x1
jax: 0.10.0
libtpu: 0.0.40
codegen_flags: <defaults>
</compile_context>

<pallas_src>
import math

import jax
import jax.numpy as jnp
from jax.experimental import pallas as pl
from jax.experimental.pallas import tpu as pltpu


def _modulator_kernel(mask_ref, field_ref, out_ref):
    """out = field * sigmoid(mask_parameters), mask broadcast over rows.

    mask_ref:  (1, cols)     raw mask parameters (pre-sigmoid)
    field_ref: (rows, cols)  flattened field block
    out_ref:   (rows, cols)
    """
    # _normalized(): sigmoid of the raw mask parameters (EUP transcendental, free slot).
    mult = jax.nn.sigmoid(mask_ref[...].astype(jnp.float32))
    out_ref[...] = (field_ref[...].astype(jnp.float32) * mult).astype(out_ref.dtype)


def modulate(field: jnp.ndarray, mask_parameters: jnp.ndarray,
             *, target_block_bytes: int = 1 << 20) -> jnp.ndarray:
    """field: (N, C, H, W), mask_parameters: (H, W). Returns field * sigmoid(mask)."""
    N, C, H, W = field.shape
    if mask_parameters.shape != (H, W):
        raise ValueError("mask_parameters must match the field spatial shape")

    HW = H * W
    R = N * C
    flat = field.reshape(R, HW)                 # lane-dense 2D view (last dim = H*W)
    mask_flat = mask_parameters.reshape(1, HW)

    itemsize = jnp.dtype(field.dtype).itemsize

    # Column tiling only kicks in for very large fields (and only if lane-aligned);
    # otherwise keep the full, lane-dense row so stores stay unmasked.
    if HW * itemsize > target_block_bytes and HW % 128 == 0:
        block_cols = min(HW, max(128, (target_block_bytes // itemsize // 128) * 128))
    else:
        block_cols = HW

    rows_cap = max(1, target_block_bytes // (block_cols * itemsize))   # ~1 MiB per tile
    if rows_cap >= R or R <= 8:
        block_rows = R                          # full extent -> always a legal block
    else:
        block_rows = max(8, (min(rows_cap, R) // 8) * 8)               # multiple of 8 sublanes

    grid = (pl.cdiv(R, block_rows), pl.cdiv(HW, block_cols))

    out_flat = pl.pallas_call(
        _modulator_kernel,
        out_shape=jax.ShapeDtypeStruct((R, HW), field.dtype),
        grid=grid,
        in_specs=[
            pl.BlockSpec((1, block_cols), lambda i, j: (0, j)),            # mask (broadcast rows)
            pl.BlockSpec((block_rows, block_cols), lambda i, j: (i, j)),   # field block
        ],
        out_specs=pl.BlockSpec((block_rows, block_cols), lambda i, j: (i, j)),
        compiler_params=pltpu.CompilerParams(
            dimension_semantics=("parallel", "parallel"),   # shard blocks across TCs on v7x
        ),
    )(mask_flat, flat)
    return out_flat.reshape(N, C, H, W)


def _closest_integer(x: float) -> int:
    return int(round(x))


def _upper_integer(x: float) -> int:
    return int(math.ceil(x))


class AbstractModulatorJAX:
    """JAX/Pallas mirror of AbstractModulator (no torch; deterministic mask init)."""

    def __init__(self, pixels_in, pixels_out, length_in, length_out, mask_pixels, key,
                 dtype=jnp.float32):
        self.pixels_in = tuple(pixels_in)       # (x, y)
        self.pixels_out = tuple(pixels_out)
        self.length_in = tuple(length_in)
        self.length_out = tuple(length_out)
        self.mask_pixels = tuple(mask_pixels)

        # AbstractElement._reset_add_pixels
        self._add_x = _upper_integer(_closest_integer(
            (self.length_out[0] - self.length_in[0]) * self.pixels_in[0] / self.length_in[0]) / 2)
        self._add_y = _upper_integer(_closest_integer(
            (self.length_out[1] - self.length_in[1]) * self.pixels_in[1] / self.length_in[1]) / 2)

        # AbstractModulator._recalc_mask_parameters: normal(0, 1, mask_pixels)
        self._mask_parameters = jax.random.normal(key, self.mask_pixels, dtype=dtype)

    @property
    def _paddings_difference(self):
        # padding_x + unpadding_x == |add_x| (same for y), as in AbstractElement.
        return (abs(self._add_x), abs(self._add_x), abs(self._add_y), abs(self._add_y))

    def _normalized(self) -> jnp.ndarray:
        return jax.nn.sigmoid(self._mask_parameters)[None, None]

    def __call__(self, field: jnp.ndarray) -> jnp.ndarray:
        # TODO(synk): fix_complex / complex-dtype fields are not translated; real-float path only.
        dpx, _, dpy, _ = self._paddings_difference
        if dpx or dpy:
            # torch.nn.functional.pad order: last dim (W) first, then H.
            field = jnp.pad(field, ((0, 0), (0, 0), (dpy, dpy), (dpx, dpx)))

        # TODO(synk): _multiplier() raises NotImplementedError in the source module; the
        # sigmoid-normalized mask (_normalized()) is used as the modulator transfer function.
        _, _, H, W = field.shape
        if self._mask_parameters.shape != (H, W):
            raise ValueError("mask_pixels must match the (padded) field spatial shape")
        field = modulate(field, self._mask_parameters)

        # interpolate(field, (pixels.output.x, pixels.output.y), bilinear)
        out_x, out_y = self.pixels_out
        if (H, W) != (out_x, out_y):
            # TODO(synk): bilinear resample to a different output grid uses jax.image.resize
            # (XLA), not a Pallas kernel.
            field = jax.image.resize(
                field, (field.shape[0], field.shape[1], out_x, out_y), method="bilinear")
        return field


if __name__ == "__main__":
    key = jax.random.PRNGKey(0)
    k_mask, k_field = jax.random.split(key)

    N, C, H, W = 2, 4, 16, 16
    field = jax.random.normal(k_field, (N, C, H, W), dtype=jnp.float32)

    modulator = AbstractModulatorJAX(
        pixels_in=(H, W), pixels_out=(H, W),
        length_in=(1.0, 1.0), length_out=(1.0, 1.0),
        mask_pixels=(H, W), key=k_mask)

    out = jax.block_until_ready(modulator(field))

    # Pure-JAX reference (pad and resize are no-ops in this default config).
    ref = field * jax.nn.sigmoid(modulator._mask_parameters)[None, None]
    assert out.shape == field.shape and out.dtype == field.dtype
    assert jnp.allclose(out, ref, rtol=1e-6, atol=1e-6)

    print("KERNEL_OK")
</pallas_src>

<mosaic_0001>
module attributes {stable_mosaic.version = 11 : i64} {
  func.func @_modulator_kernel(%arg0: i32, %arg1: i32, %arg2: memref<1x256xf32, #tpu.memory_space<vmem>>, %arg3: memref<8x256xf32, #tpu.memory_space<vmem>>, %arg4: memref<8x256xf32, #tpu.memory_space<vmem>>) attributes {dimension_semantics = [#tpu.dimension_semantics<parallel>, #tpu.dimension_semantics<parallel>], iteration_bounds = array<i64: 1, 1>, scalar_prefetch = 0 : i64, scratch_operands = 0 : i64, tpu.core_type = #tpu.core_type<tc>, window_params = [{transform_indices = @transform_0, window_bounds = array<i64: 1, 256>}, {transform_indices = @transform_1, window_bounds = array<i64: 8, 256>}, {transform_indices = @transform_2, window_bounds = array<i64: 8, 256>}]} {
    %c0 = arith.constant 0 : index
    %c0_0 = arith.constant 0 : index
    %0 = vector.load %arg2[%c0, %c0_0] : memref<1x256xf32, #tpu.memory_space<vmem>>, vector<1x256xf32>
    %1 = arith.negf %0 : vector<1x256xf32>
    %2 = math.exp %1 : vector<1x256xf32>
    %cst = arith.constant 1.000000e+00 : f32
    %3 = vector.broadcast %cst : f32 to vector<1x256xf32>
    %4 = arith.addf %3, %2 : vector<1x256xf32>
    %5 = arith.divf %3, %4 : vector<1x256xf32>
    %c0_1 = arith.constant 0 : index
    %c0_2 = arith.constant 0 : index
    %6 = vector.load %arg3[%c0_1, %c0_2] : memref<8x256xf32, #tpu.memory_space<vmem>>, vector<8x256xf32>
    %7 = vector.broadcast %5 : vector<1x256xf32> to vector<8x256xf32>
    %8 = arith.mulf %6, %7 : vector<8x256xf32>
    %c0_3 = arith.constant 0 : index
    %c0_4 = arith.constant 0 : index
    %9 = vector.load %arg4[%c0_3, %c0_4] : memref<8x256xf32, #tpu.memory_space<vmem>>, vector<8x256xf32>
    tpu.vector_store %arg4[%c0_3, %c0_4], %8 {strides = array<i32>} : memref<8x256xf32, #tpu.memory_space<vmem>>, vector<8x256xf32>,
    return
  }
  func.func @transform_0(%arg0: i32, %arg1: i32) -> (i32, i32) {
    %c0_i32 = arith.constant 0 : i32
    %c0_i32_0 = arith.constant 0 : i32
    return %c0_i32, %arg1 : i32, i32
  }
  func.func @transform_1(%arg0: i32, %arg1: i32) -> (i32, i32) {
    %c0_i32 = arith.constant 0 : i32
    return %arg0, %arg1 : i32, i32
  }
  func.func @transform_2(%arg0: i32, %arg1: i32) -> (i32, i32) {
    %c0_i32 = arith.constant 0 : i32
    return %arg0, %arg1 : i32, i32
  }
}

</mosaic_0001>

<llo_original>
// kernel: tpu_custom_call.1
$region0: #{tpu_custom_call.1}
  #allocation0 [shape = 'u32[]', space=smem, size = 0x4, offset = 0x4, fixed_abs, tag = 'smem constant byte address 0x4 - core index']
  #allocation1 [shape = 'u32[144,128]{1,0:T(1,128)}', space=vmem, size = 0x12000, scoped, tag = 'internal scratch']
  %s0 = inlined_call_operand.hbm [shape: f32[1,256], index: 0, kind: input, shape index: {}]
  %s1 = inlined_call_operand.hbm [shape: f32[8,256], index: 1, kind: input, shape index: {}]
  %s2 = inlined_call_operand.hbm [shape: f32[8,256], index: 2, kind: output, shape index: {}]
  %s3 = sld [smem:[#allocation0]]
  $region26: #{tpu_custom_call.1} parent=0
    _
  %s5 = ssub.s32 1, %s3
  %s6 = scalar_select 0, %s5, %s3
  $region1: #{tpu_custom_call.1} parent=0
    #allocation2 [shape = 'u8[1024]{0}', space=vmem, size = 0x400, scoped, tag = 'input window, operand 0, single buffered']
    #allocation3 [shape = 's32[1]{0}', space=sflag, size = 0x4, scoped, tag = 'scoped memory for tpu_custom_call.1']
    #allocation4 [shape = 's32[1]{0}', space=sflag, size = 0x4, scoped, tag = 'scoped memory for tpu_custom_call.1']
    #allocation5 [shape = 'u8[8192]{0}', space=vmem, size = 0x2000, scoped, tag = 'input window, operand 1, single buffered']
    #allocation6 [shape = 's32[1]{0}', space=sflag, size = 0x4, scoped, tag = 'scoped memory for tpu_custom_call.1']
    #allocation7 [shape = 'u8[8192]{0}', space=vmem, size = 0x2000, scoped, tag = 'output window, operand 0, single buffered']
    %7 = vsyncpa [#allocation3], 0
    %8 = vsyncpa [#allocation6], 0
    %9 = vsyncpa [#allocation4], 0
    // Predicated region
    $region2: #{tpu_custom_call.1} parent=1 // pred_check
      _
    $region3: #{tpu_custom_call.1} parent=1 // pred_check_branch
      %11 = sbr.rel (0) target = $region5
    $region4: #{tpu_custom_call.1} parent=1 // pred_region
      %s13 = ssub.s32 32, 32
      %14 = vsyncadd [#allocation3], %s13
      %s16 = sshll.u32 [#allocation2], 4
      %s17 = int_to_ptr.vmem [resolvable:$true] %s16
      %19 = dma.hbm_to_vmem [thread:$0]  %s0, 32, %s17, [#allocation3]
    $region5: #{tpu_custom_call.1} parent=1 // pred_fallthru
      _
    // Predicated region
    $region6: #{tpu_custom_call.1} parent=1 // pred_check
      _
    $region7: #{tpu_custom_call.1} parent=1 // pred_check_branch
      %21 = sbr.rel (0) target = $region9
    $region8: #{tpu_custom_call.1} parent=1 // pred_region
      %s23 = ssub.s32 256, 256
      %24 = vsyncadd [#allocation6], %s23
      %s26 = sshll.u32 [#allocation5], 4
      %s27 = int_to_ptr.vmem [resolvable:$true] %s26
      %29 = dma.hbm_to_vmem [thread:$0]  %s1, 256, %s27, [#allocation6]
    $region9: #{tpu_custom_call.1} parent=1 // pred_fallthru
      _
    // Predicated region
    $region10: #{tpu_custom_call.1} parent=1 // pred_check
      _
    $region11: #{tpu_custom_call.1} parent=1 // pred_check_branch
      %31 = sbr.rel (0) target = $region13
    $region12: #{tpu_custom_call.1} parent=1 // pred_region
      %32 = dma.done [#allocation3], 32
    $region13: #{tpu_custom_call.1} parent=1 // pred_fallthru
      _
    // Predicated region
    $region14: #{tpu_custom_call.1} parent=1 // pred_check
      _
    $region15: #{tpu_custom_call.1} parent=1 // pred_check_branch
      %34 = sbr.rel (0) target = $region17
    $region16: #{tpu_custom_call.1} parent=1 // pred_region
      %35 = dma.done [#allocation6], 256
    $region17: #{tpu_custom_call.1} parent=1 // pred_fallthru
      _
    %v36 = vld [vmem:[#allocation2] sm:$0x3]
    %v37 = vxor.u32 %v36, 2147483648
    %v38 = vmul.f32 %v37, 1.442695
    %v39 = vpow.pop %v38
    %v40 = vadd.f32 %v39, 1.0
    %v41 = vrcp.pop %v40
    %v42 = vmul.f32 1.0, %v41
    %v43 = vld [vmem:[#allocation5] sm:$0xff]
    %v44 = vld [vmem:[#allocation5 + $0x8] sm:$0xff]
    %v46 = vlaneseq
    %v47 = vshrl.u32 %v46, 7
    %v48 = vsub.s32 0, %v47
    %v49 = vrot.slane %v42, %v48
    %v50 = vlaneseq
    %v51 = vshrl.u32 %v50, 7
    %v52 = vsub.s32 1, %v51
    %v53 = vrot.slane %v42, %v52
    %v56 = vmul.f32 %v43, %v49
    %v57 = vmul.f32 %v44, %v53
    %58 = vst [vmem:[#allocation7] sm:$0xff] %v56
    %59 = vst [vmem:[#allocation7 + $0x8] sm:$0xff] %v57
    // Predicated region
    $region18: #{tpu_custom_call.1} parent=1 // pred_check
      _
    $region19: #{tpu_custom_call.1} parent=1 // pred_check_branch
      %61 = sbr.rel (0) target = $region21
    $region20: #{tpu_custom_call.1} parent=1 // pred_region
      %s63 = ssub.s32 256, 256
      %64 = vsyncadd [#allocation4], %s63
      %s66 = sshll.u32 [#allocation7], 4
      %s67 = int_to_ptr.vmem [resolvable:$true] %s66
      %69 = dma.vmem_to_hbm [thread:$0]  %s67, 256, %s2, [#allocation4]
    $region21: #{tpu_custom_call.1} parent=1 // pred_fallthru
      _
    // Predicated region
    $region22: #{tpu_custom_call.1} parent=1 // pred_check
      _
    $region23: #{tpu_custom_call.1} parent=1 // pred_check_branch
      %71 = sbr.rel (0) target = $region25
    $region24: #{tpu_custom_call.1} parent=1 // pred_region
      %72 = dma.done [#allocation4], 256
    $region25: #{tpu_custom_call.1} parent=1 // pred_fallthru
      _
    %73 = vsyncpa [#allocation3], 1
    %74 = vsyncpa [#allocation6], 1
    %75 = vsyncpa [#allocation4], 1

</llo_original>
